<compile_context>
chip_gen: v6e
topology: v6e:2x2x1
jax: 0.10.0
libtpu: 0.0.40
codegen_flags: <defaults>
</compile_context>

<pallas_src>
import jax
import jax.numpy as jnp
from jax.experimental import pallas as pl
from jax.experimental.pallas import tpu as pltpu


_MAX_GROUPS = 16          # cap on (B*N) groups fused per grid step (static unroll)
_ROW_TARGET_CAP = 8192    # diminishing returns past this many rows per step


def _cdiv(a, b):
    return -(-a // b)


def _vmem_capacity_bytes():
    try:
        return int(pltpu.get_tpu_info().vmem_capacity_bytes)
    except Exception:
        return 64 << 20   # conservative (v7x-sized) fallback


# ---------------------------------------------------------------------------
# Kernel
# ---------------------------------------------------------------------------
def _gated_fusion_kernel(hs_ref, ht_ref, w1_ref, w2_ref, o_ref):
    """One grid step: G groups x ts sequence positions.

    hs_ref, ht_ref : (G, ts, d_out)       activations, original dtype (cast in-kernel)
    w1_ref         : (2*d_out, 2*d_inner) combined layer-1 weight [[Ws, Ws], [Wt, -Wt]]
    w2_ref         : (d_inner, d_out)     w_out.T
    o_ref          : (G, d_out, ts)       lane-dense along the sequence dim
    """
    G, ts, d_out = hs_ref.shape
    d_inner = w2_ref.shape[0]
    cdt = w1_ref.dtype
    rows = G * ts

    hs = hs_ref[...].reshape(rows, d_out)
    ht = ht_ref[...].reshape(rows, d_out)

    # Layer 1 as ONE MXU pass at contraction depth K = 2*d_out (instead of two
    # lane-sparse K = d_out pushes):
    #   [hs | ht] @ [[Ws, Ws], [Wt, -Wt]] = [hs@Ws + ht@Wt, hs@Ws - ht@Wt] = [s, d]
    x = jnp.concatenate([hs, ht], axis=-1).astype(cdt)       # in-kernel cast only
    p = jnp.dot(x, w1_ref[...], preferred_element_type=jnp.float32)
    s = p[:, :d_inner]            # = hs_p + ht_p
    d = p[:, d_inner:]            # = hs_p - ht_p

    z = jax.nn.sigmoid(s)         # f32 gate math (EUP)
    h = 0.5 * (s - d) + z * d     # == z*hs_p + (1-z)*ht_p

    # Layer 2 in standard (M,K)@(K,N) form, then transpose the *smaller*
    # (rows, d_out) result so the stored tile is lane-dense along S.
    o2 = jnp.dot(h.astype(cdt), w2_ref[...],
                 preferred_element_type=jnp.float32).astype(o_ref.dtype)
    for g in range(G):            # G is capped small -> cheap static unroll
        o_ref[g] = o2[g * ts:(g + 1) * ts, :].T


# ---------------------------------------------------------------------------
# Tile sizing
# ---------------------------------------------------------------------------
def _choose_tiles(BN, S, d_out, d_inner, in_b, out_b, budget, w_resident):
    # Per-row (per sequence position) VMEM footprint estimate.
    per_row = (2 * d_out * in_b * 2        # hs/ht streaming tiles, double-buffered
               + d_out * out_b * 2         # output tile, double-buffered
               + 2 * d_out * 4             # concatenated X
               + 6 * d_inner * 4           # p / s / d / z / h f32 temps
               + 2 * d_out * 4)            # layer-2 result + transpose temp
    rows_budget = max(8, (budget - w_resident) // per_row)
    row_target = int(min(rows_budget, _ROW_TARGET_CAP))

    if S <= 128:
        ts = S                                                 # full-extent block
    else:
        ts = max(128, (min(S, row_target) // 128) * 128)       # lane-dense tile

    G = int(max(1, min(BN, _MAX_GROUPS, max(1, row_target // ts))))
    if ts % 8 != 0:
        G = 1   # keep the in-kernel (G,ts,d)->(G*ts,d) reshape layout-preserving

    # Keep >= 2 grid steps so both v7x TensorCores get work ("parallel" axes).
    if _cdiv(BN, G) * _cdiv(S, ts) < 2:
        if BN >= 2:
            G = (BN + 1) // 2
        elif S >= 256:
            ts = max(128, ((S // 2) // 128) * 128)
    return G, ts


# ---------------------------------------------------------------------------
# Weight preparation (hoistable to module init)
# ---------------------------------------------------------------------------
def prepare_gated_fusion_weights(w_s, w_t, w_out, compute_dtype=None):
    """Pre-transpose / pre-combine the three nn.Linear weights.

    In a real model call this once at parameter init and pass the result via
    `prepared_weights=` so the per-forward wrapper does no weight work.
    """
    cdt = jnp.dtype(compute_dtype) if compute_dtype is not None else jnp.dtype(w_s.dtype)
    ws_t = w_s.T                                  # (d_out, d_inner)
    wt_t = w_t.T
    w1 = jnp.concatenate(
        [jnp.concatenate([ws_t, ws_t], axis=1),
         jnp.concatenate([wt_t, -wt_t], axis=1)], axis=0).astype(cdt)  # (2do, 2di)
    w2 = w_out.T.astype(cdt)                      # (d_inner, d_out)
    return w1, w2


# ---------------------------------------------------------------------------
# Wrapper
# ---------------------------------------------------------------------------
def gated_fusion(hs, ht, w_s=None, w_t=None, w_out=None, *,
                 compute_dtype=None, prepared_weights=None):
    """HARN gatedFusion forward.

    hs, ht  : [B, N, S, d_out]
    w_s, w_t: [d_inner, d_out]   (PyTorch nn.Linear weight layout)
    w_out   : [d_out, d_inner]
    Returns : [B, N, d_out, S]   (== PyTorch H.transpose(2, 3))

    compute_dtype: MXU / streaming dtype.  Default None = input dtype (exact).
        Pass jnp.bfloat16 to opt into bf16 MXU streaming; activations stay in
        their original dtype in HBM (cast happens in-kernel), gate math is f32.
    prepared_weights: optional (w1, w2) from prepare_gated_fusion_weights().
    """
    B, N, S, d_out = hs.shape
    BN = B * N
    out_dtype = hs.dtype
    cdt = jnp.dtype(compute_dtype) if compute_dtype is not None else jnp.dtype(hs.dtype)

    if prepared_weights is None:
        # TODO(synk): hoist to module init in a real model (per-call transposes
        # are an extra HBM pass at production d).
        w1, w2 = prepare_gated_fusion_weights(w_s, w_t, w_out, cdt)
    else:
        w1, w2 = prepared_weights
        cdt = jnp.dtype(w1.dtype)
    d_inner = w2.shape[0]

    in_b = jnp.dtype(hs.dtype).itemsize
    out_b = jnp.dtype(out_dtype).itemsize
    cdt_b = jnp.dtype(cdt).itemsize

    vmem_cap = _vmem_capacity_bytes()
    budget = int(vmem_cap * 0.5)

    w_bytes = int((w1.size + w2.size) * cdt_b)      # resident weights, single copy
    single_buf_weights = (2 * w_bytes) > (4 << 20)  # only bother when weights are big
    w_resident = w_bytes if single_buf_weights else 2 * w_bytes
    if w_resident > int(0.7 * budget):
        # TODO(synk): K-tile d_inner/d_out with a grid reduction axis + f32 VMEM
        # accumulator instead of keeping the full weights resident.
        raise ValueError(
            f"gated_fusion: resident weights ({w_resident / 2**20:.1f} MiB) exceed "
            f"the VMEM budget ({budget / 2**20:.1f} MiB); K-tiling not implemented.")

    G, ts = _choose_tiles(BN, S, d_out, d_inner, in_b, out_b, budget, w_resident)

    per_step = (2 * G * ts * d_out * in_b * 2 + G * ts * d_out * out_b * 2
                + 8 * G * ts * d_inner * 4)
    vmem_limit = int(min(int(vmem_cap * 0.75),
                         max(32 << 20, int((w_resident + per_step) * 1.5))))

    # Metadata-only reshapes; NO dtype cast here (cast happens in-kernel).
    hs3 = hs.reshape(BN, S, d_out)
    ht3 = ht.reshape(BN, S, d_out)

    def _weight_spec(shape):
        idx = lambda g, s: (0, 0)
        if single_buf_weights:
            try:
                # Constant-index weights: single-buffer to halve their VMEM.
                return pl.BlockSpec(shape, idx, pipeline_mode=pl.Buffered(1))
            except TypeError:          # older jax without pipeline_mode / Buffered
                pass
        return pl.BlockSpec(shape, idx)

    rows_total = BN * S
    cost = pl.CostEstimate(
        flops=2 * rows_total * (2 * d_out) * (2 * d_inner)
              + 2 * rows_total * d_inner * d_out,
        transcendentals=rows_total * d_inner,
        bytes_accessed=2 * rows_total * d_out * in_b
                       + rows_total * d_out * out_b + w_bytes)

    out3 = pl.pallas_call(
        _gated_fusion_kernel,
        out_shape=jax.ShapeDtypeStruct((BN, d_out, S), out_dtype),
        grid_spec=pltpu.PrefetchScalarGridSpec(
            num_scalar_prefetch=0,
            grid=(_cdiv(BN, G), _cdiv(S, ts)),   # cdiv grid: no divisibility
            in_specs=[                           # requirement; boundary blocks masked
                pl.BlockSpec((G, ts, d_out), lambda g, s: (g, s, 0)),
                pl.BlockSpec((G, ts, d_out), lambda g, s: (g, s, 0)),
                _weight_spec((2 * d_out, 2 * d_inner)),
                _weight_spec((d_inner, d_out)),
            ],
            out_specs=pl.BlockSpec((G, d_out, ts), lambda g, s: (g, 0, s)),
        ),
        compiler_params=pltpu.CompilerParams(
            dimension_semantics=("parallel", "parallel"),
            vmem_limit_bytes=vmem_limit),
        cost_estimate=cost,
    )(hs3, ht3, w1, w2)

    return out3.reshape(B, N, d_out, S)


# ---------------------------------------------------------------------------
# Pure-JAX reference (mirrors the PyTorch module)
# ---------------------------------------------------------------------------
def _reference(hs, ht, w_s, w_t, w_out):
    hs_p = hs @ w_s.T
    ht_p = ht @ w_t.T
    z = jax.nn.sigmoid(hs_p + ht_p)
    H = z * hs_p + (1.0 - z) * ht_p
    return jnp.swapaxes(H @ w_out.T, 2, 3)


if __name__ == "__main__":
    key = jax.random.PRNGKey(0)
    k_hs, k_ht, k_ws, k_wt, k_w = jax.random.split(key, 5)

    d_output, d_inner = 32, 64
    w_s = jax.random.normal(k_ws, (d_inner, d_output), dtype=jnp.float32) * 0.1
    w_t = jax.random.normal(k_wt, (d_inner, d_output), dtype=jnp.float32) * 0.1
    w_o = jax.random.normal(k_w, (d_output, d_inner), dtype=jnp.float32) * 0.1

    def _check(B, N, S, tol, **kw):
        hs = jax.random.normal(k_hs, (B, N, S, d_output), dtype=jnp.float32)
        ht = jax.random.normal(k_ht, (B, N, S, d_output), dtype=jnp.float32)
        out = jax.block_until_ready(gated_fusion(hs, ht, w_s, w_t, w_o, **kw))
        ref = _reference(hs, ht, w_s, w_t, w_o)
        assert out.shape == (B, N, d_output, S), out.shape
        assert jnp.allclose(out, ref, atol=tol, rtol=tol), \
            float(jnp.max(jnp.abs(out - ref)))

    # Case 1: tiny S (< 128): full-extent S blocks, grid split over (B*N) groups.
    _check(2, 4, 8, 2e-3)
    # Case 1b: bf16 streaming opt-in (in-kernel cast; inputs stay f32 in HBM).
    _check(2, 4, 8, 5e-2, compute_dtype=jnp.bfloat16)
    # Case 2: lane-dense S (multiple of 128).
    _check(1, 2, 128, 2e-3)
    # Case 3: S > 128 and not a multiple of 128 -> cdiv grid with a masked
    #         boundary tile (no wrapper pad, no flattened fallback path).
    _check(1, 1, 200, 2e-3)
    # Case 4: weight prep hoisted out of the forward call.
    pw = prepare_gated_fusion_weights(w_s, w_t, w_o)
    _check(1, 2, 128, 2e-3, prepared_weights=pw)

    print("KERNEL_OK")
</pallas_src>

<mosaic_0001>
module attributes {stable_mosaic.version = 11 : i64} {
  func.func @_gated_fusion_kernel(%arg0: i32, %arg1: i32, %arg2: memref<4x8x32xf32, #tpu.memory_space<vmem>>, %arg3: memref<4x8x32xf32, #tpu.memory_space<vmem>>, %arg4: memref<64x128xf32, #tpu.memory_space<vmem>>, %arg5: memref<64x32xf32, #tpu.memory_space<vmem>>, %arg6: memref<4x32x8xf32, #tpu.memory_space<vmem>>) attributes {dimension_semantics = [#tpu.dimension_semantics<parallel>, #tpu.dimension_semantics<parallel>], iteration_bounds = array<i64: 2, 1>, scalar_prefetch = 0 : i64, scratch_operands = 0 : i64, tpu.core_type = #tpu.core_type<tc>, window_params = [{transform_indices = @transform_0, window_bounds = array<i64: 4, 8, 32>}, {transform_indices = @transform_1, window_bounds = array<i64: 4, 8, 32>}, {pipeline_mode = #tpu.pipeline_mode<synchronous>, transform_indices = @transform_2, window_bounds = array<i64: 64, 128>}, {pipeline_mode = #tpu.pipeline_mode<synchronous>, transform_indices = @transform_3, window_bounds = array<i64: 64, 32>}, {transform_indices = @transform_4, window_bounds = array<i64: 4, 32, 8>}]} {
    %c0 = arith.constant 0 : index
    %c0_0 = arith.constant 0 : index
    %c0_1 = arith.constant 0 : index
    %0 = vector.load %arg2[%c0, %c0_0, %c0_1] : memref<4x8x32xf32, #tpu.memory_space<vmem>>, vector<4x8x32xf32>
    %1 = vector.shape_cast %0 : vector<4x8x32xf32> to vector<32x32xf32>
    %c0_2 = arith.constant 0 : index
    %c0_3 = arith.constant 0 : index
    %c0_4 = arith.constant 0 : index
    %2 = vector.load %arg3[%c0_2, %c0_3, %c0_4] : memref<4x8x32xf32, #tpu.memory_space<vmem>>, vector<4x8x32xf32>
    %3 = vector.shape_cast %2 : vector<4x8x32xf32> to vector<32x32xf32>
    %4 = tpu.concatenate %1, %3 in 1 : vector<32x32xf32>, vector<32x32xf32> -> vector<32x64xf32>
    %c0_5 = arith.constant 0 : index
    %c0_6 = arith.constant 0 : index
    %5 = vector.load %arg4[%c0_5, %c0_6] : memref<64x128xf32, #tpu.memory_space<vmem>>, vector<64x128xf32>
    %cst = arith.constant dense<0.000000e+00> : vector<32x128xf32>
    %6 = tpu.matmul %4, %5, %cst {dimension_numbers = #tpu.dot_dimension_numbers<[1], [0], [0], [1], [0, 0, 1, 1], [], []>} : vector<32x64xf32>, vector<64x128xf32>, vector<32x128xf32> -> vector<32x128xf32>
    %7 = vector.extract_strided_slice %6 {offsets = [0, 0], sizes = [32, 64], strides = [1, 1]} : vector<32x128xf32> to vector<32x64xf32>
    %8 = vector.extract_strided_slice %6 {offsets = [0, 64], sizes = [32, 64], strides = [1, 1]} : vector<32x128xf32> to vector<32x64xf32>
    %9 = arith.negf %7 : vector<32x64xf32>
    %10 = math.exp %9 : vector<32x64xf32>
    %cst_7 = arith.constant 1.000000e+00 : f32
    %11 = vector.broadcast %cst_7 : f32 to vector<32x64xf32>
    %12 = arith.addf %11, %10 : vector<32x64xf32>
    %13 = arith.divf %11, %12 : vector<32x64xf32>
    %14 = arith.subf %7, %8 : vector<32x64xf32>
    %cst_8 = arith.constant 5.000000e-01 : f32
    %15 = vector.broadcast %cst_8 : f32 to vector<32x64xf32>
    %16 = arith.mulf %15, %14 : vector<32x64xf32>
    %17 = arith.mulf %13, %8 : vector<32x64xf32>
    %18 = arith.addf %16, %17 : vector<32x64xf32>
    %c0_9 = arith.constant 0 : index
    %c0_10 = arith.constant 0 : index
    %19 = vector.load %arg5[%c0_9, %c0_10] : memref<64x32xf32, #tpu.memory_space<vmem>>, vector<64x32xf32>
    %cst_11 = arith.constant dense<0.000000e+00> : vector<32x32xf32>
    %20 = tpu.matmul %18, %19, %cst_11 {dimension_numbers = #tpu.dot_dimension_numbers<[1], [0], [0], [1], [0, 0, 1, 1], [], []>} : vector<32x64xf32>, vector<64x32xf32>, vector<32x32xf32> -> vector<32x32xf32>
    %21 = vector.extract_strided_slice %20 {offsets = [0, 0], sizes = [8, 32], strides = [1, 1]} : vector<32x32xf32> to vector<8x32xf32>
    %22 = tpu.transpose %21, [1, 0] : vector<8x32xf32> -> vector<32x8xf32>
    %c0_12 = arith.constant 0 : index
    %c0_13 = arith.constant 0 : index
    %c0_14 = arith.constant 0 : index
    %23 = vector.load %arg6[%c0_12, %c0_13, %c0_14] : memref<4x32x8xf32, #tpu.memory_space<vmem>>, vector<1x32x8xf32>
    %24 = vector.shape_cast %23 : vector<1x32x8xf32> to vector<32x8xf32>
    %25 = vector.shape_cast %22 : vector<32x8xf32> to vector<1x32x8xf32>
    tpu.vector_store %arg6[%c0_12, %c0_13, %c0_14], %25 {strides = array<i32>} : memref<4x32x8xf32, #tpu.memory_space<vmem>>, vector<1x32x8xf32>,
    %26 = vector.extract_strided_slice %20 {offsets = [8, 0], sizes = [8, 32], strides = [1, 1]} : vector<32x32xf32> to vector<8x32xf32>
    %27 = tpu.transpose %26, [1, 0] : vector<8x32xf32> -> vector<32x8xf32>
    %c1 = arith.constant 1 : index
    %c0_15 = arith.constant 0 : index
    %c0_16 = arith.constant 0 : index
    %28 = vector.load %arg6[%c1, %c0_15, %c0_16] : memref<4x32x8xf32, #tpu.memory_space<vmem>>, vector<1x32x8xf32>
    %29 = vector.shape_cast %28 : vector<1x32x8xf32> to vector<32x8xf32>
    %30 = vector.shape_cast %27 : vector<32x8xf32> to vector<1x32x8xf32>
    tpu.vector_store %arg6[%c1, %c0_15, %c0_16], %30 {strides = array<i32>} : memref<4x32x8xf32, #tpu.memory_space<vmem>>, vector<1x32x8xf32>,
    %31 = vector.extract_strided_slice %20 {offsets = [16, 0], sizes = [8, 32], strides = [1, 1]} : vector<32x32xf32> to vector<8x32xf32>
    %32 = tpu.transpose %31, [1, 0] : vector<8x32xf32> -> vector<32x8xf32>
    %c2 = arith.constant 2 : index
    %c0_17 = arith.constant 0 : index
    %c0_18 = arith.constant 0 : index
    %33 = vector.load %arg6[%c2, %c0_17, %c0_18] : memref<4x32x8xf32, #tpu.memory_space<vmem>>, vector<1x32x8xf32>
    %34 = vector.shape_cast %33 : vector<1x32x8xf32> to vector<32x8xf32>
    %35 = vector.shape_cast %32 : vector<32x8xf32> to vector<1x32x8xf32>
    tpu.vector_store %arg6[%c2, %c0_17, %c0_18], %35 {strides = array<i32>} : memref<4x32x8xf32, #tpu.memory_space<vmem>>, vector<1x32x8xf32>,
    %36 = vector.extract_strided_slice %20 {offsets = [24, 0], sizes = [8, 32], strides = [1, 1]} : vector<32x32xf32> to vector<8x32xf32>
    %37 = tpu.transpose %36, [1, 0] : vector<8x32xf32> -> vector<32x8xf32>
    %c3 = arith.constant 3 : index
    %c0_19 = arith.constant 0 : index
    %c0_20 = arith.constant 0 : index
    %38 = vector.load %arg6[%c3, %c0_19, %c0_20] : memref<4x32x8xf32, #tpu.memory_space<vmem>>, vector<1x32x8xf32>
    %39 = vector.shape_cast %38 : vector<1x32x8xf32> to vector<32x8xf32>
    %40 = vector.shape_cast %37 : vector<32x8xf32> to vector<1x32x8xf32>
    tpu.vector_store %arg6[%c3, %c0_19, %c0_20], %40 {strides = array<i32>} : memref<4x32x8xf32, #tpu.memory_space<vmem>>, vector<1x32x8xf32>,
    return
  }
  func.func @transform_0(%arg0: i32, %arg1: i32) -> (i32, i32, i32) {
    %c0_i32 = arith.constant 0 : i32
    %c0_i32_0 = arith.constant 0 : i32
    return %arg0, %arg1, %c0_i32 : i32, i32, i32
  }
  func.func @transform_1(%arg0: i32, %arg1: i32) -> (i32, i32, i32) {
    %c0_i32 = arith.constant 0 : i32
    %c0_i32_0 = arith.constant 0 : i32
    return %arg0, %arg1, %c0_i32 : i32, i32, i32
  }
  func.func @transform_2(%arg0: i32, %arg1: i32) -> (i32, i32) {
    %c0_i32 = arith.constant 0 : i32
    %c0_i32_0 = arith.constant 0 : i32
    %c0_i32_1 = arith.constant 0 : i32
    return %c0_i32, %c0_i32_0 : i32, i32
  }
  func.func @transform_3(%arg0: i32, %arg1: i32) -> (i32, i32) {
    %c0_i32 = arith.constant 0 : i32
    %c0_i32_0 = arith.constant 0 : i32
    %c0_i32_1 = arith.constant 0 : i32
    return %c0_i32, %c0_i32_0 : i32, i32
  }
  func.func @transform_4(%arg0: i32, %arg1: i32) -> (i32, i32, i32) {
    %c0_i32 = arith.constant 0 : i32
    %c0_i32_0 = arith.constant 0 : i32
    return %arg0, %c0_i32, %arg1 : i32, i32, i32
  }
}

</mosaic_0001>

<llo_original>
// kernel: tpu_custom_call.1
$region0: #{tpu_custom_call.1}
  #allocation0 [shape = 'u32[]', space=smem, size = 0x4, offset = 0x4, fixed_abs, tag = 'smem constant byte address 0x4 - core index']
  #allocation1 [shape = 'u32[144,128]{1,0:T(1,128)}', space=vmem, size = 0x12000, scoped, tag = 'internal scratch']
  %s0 = inlined_call_operand.vmem [shape: f32[8,8,32], index: 0, kind: input, shape index: {}]
  %s1 = inlined_call_operand.hbm [shape: f32[8,8,32], index: 1, kind: input, shape index: {}]
  %s2 = inlined_call_operand.hbm [shape: f32[64,128], index: 2, kind: input, shape index: {}]
  %s3 = inlined_call_operand.vmem [shape: f32[64,32], index: 3, kind: input, shape index: {}]
  %s4 = inlined_call_operand.vmem [shape: f32[8,32,8], index: 4, kind: output, shape index: {}]
  %s5 = sld [smem:[#allocation0]]
  $region57: #{tpu_custom_call.1} parent=0
    _
  %s7 = ssub.s32 1, %s5
  %s8 = scalar_select 0, %s7, %s5
  $region1: #{tpu_custom_call.1} parent=0
    #allocation2 [shape = 'u8[32768]{0}', space=vmem, size = 0x8000, scoped, tag = 'input window, operand 1']
    #allocation3 [shape = 's32[2]{0}', space=sflag, size = 0x8, scoped, tag = 'scoped memory for tpu_custom_call.1']
    #allocation4 [shape = 'u8[32768]{0}', space=vmem, size = 0x8000, scoped, tag = 'input window, operand 2, single buffered']
    #allocation5 [shape = 's32[1]{0}', space=sflag, size = 0x4, scoped, tag = 'scoped memory for tpu_custom_call.1']
    %9 = vsyncpa [#allocation3], 0
    %s10 = scalar_lea.sflag [#allocation3], 1
    %11 = vsyncpa %s10, 0
    %12 = vsyncpa [#allocation5], 0
    loop: start=0, step=1, limit=4
    $region2: #{tpu_custom_call.1} parent=1 // loop_pre_header
      _
    $region3: #{tpu_custom_call.1} parent=1 // loop_header
      %s14 = sphi 0, %s18
      %p15 = scmp.ge.s32.totalorder %s14, 4
      %s21 = sphi 0, %s33
      %s22 = sphi 0, %s29
      %s23 = sphi 0, %s21
      %s24 = sphi 0, %s22
      %s25 = sphi 0, %s23
      %s26 = sphi 0, %s24
      %s38 = sphi 0, %s40
      %s41 = sphi 0, %s38
      %s42 = sphi 0, %s41
      %s58 = sphi 0, %s42
      %s66 = sphi 0, %s68
      %s69 = sphi 0, %s66
      %s70 = sphi 0, %s69
      %s86 = sphi 0, %s70
      %s90 = sphi 0, %s90
      %s92 = sphi 0, %s90
      %s93 = sphi 0, %s92
      %s107 = sphi 0, %s93
      %s111 = sphi 0, %s111
      %s113 = sphi 0, %s111
      %s114 = sphi 0, %s113
      %s128 = sphi 0, %s114
      %s136 = sphi 0, %s138
      %s139 = sphi 0, %s136
      %s140 = sphi 0, %s139
      %s156 = sphi 0, %s140
    $region4: #{tpu_custom_call.1} parent=1 // loop_header_branch
      %17 = sbr.rel (%p15) target = $region8
    $region5: #{tpu_custom_call.1} parent=1 // loop_body
      %s19 = ssub.s32 %s14, 1
      %s20 = ssub.s32 %s14, 2
      %s27 = sadd.s32 1, %s22
      %p28 = scmp.ge.s32.totalorder %s27, 1
      %s29 = scalar_select %p28, 0, %s27
      %s30 = sadd.s32 1, %s21
      %s31 = scalar_select %p28, %s30, %s21
      %p32 = scmp.ge.s32.totalorder %s31, 2
      %s33 = scalar_select %p32, 0, %s31
      %s34 = ssub.s32 %s21, %s33
      %s35 = ssub.s32 %s22, %s29
      %s36 = sor.u32 %s34, %s35
      %p37 = scmp.eq.s32.totalorder %s36, 0
      %s39 = sadd.s32 %s38, 1
      %s40 = scalar_select %p37, %s38, %s39
      %p43 = pneg %p37
      %p44 = scmp.eq.s32.totalorder %s14, 1
      %p45 = por %p43, %p44
      %p46 = scmp.ne.s32.totalorder %s38, %s41
      %p47 = scmp.eq.s32.totalorder %s14, 0
      %p48 = por %p46, %p47
      %p49 = scmp.ne.s32.totalorder %s38, %s41
      %p50 = scmp.eq.s32.totalorder %s19, 1
      %p51 = por %p49, %p50
      %p52 = scmp.ne.s32.totalorder %s41, %s42
      %p53 = scmp.eq.s32.totalorder %s19, 0
      %p54 = por %p52, %p53
      %p55 = scmp.ne.s32.totalorder %s41, %s42
      %p56 = scmp.eq.s32.totalorder %s20, 1
      %p57 = por %p55, %p56
      %p59 = scmp.ne.s32.totalorder %s42, %s58
      %p60 = scmp.eq.s32.totalorder %s20, 0
      %p61 = por %p59, %p60
      %s62 = ssub.s32 %s21, %s33
      %s63 = ssub.s32 %s22, %s29
      %s64 = sor.u32 %s62, %s63
      %p65 = scmp.eq.s32.totalorder %s64, 0
      %s67 = sadd.s32 %s66, 1
      %s68 = scalar_select %p65, %s66, %s67
      %p71 = pneg %p65
      %p72 = scmp.eq.s32.totalorder %s14, 1
      %p73 = por %p71, %p72
      %p74 = scmp.ne.s32.totalorder %s66, %s69
      %p75 = scmp.eq.s32.totalorder %s14, 0
      %p76 = por %p74, %p75
      %p77 = scmp.ne.s32.totalorder %s66, %s69
      %p78 = scmp.eq.s32.totalorder %s19, 1
      %p79 = por %p77, %p78
      %p80 = scmp.ne.s32.totalorder %s69, %s70
      %p81 = scmp.eq.s32.totalorder %s19, 0
      %p82 = por %p80, %p81
      %p83 = scmp.ne.s32.totalorder %s69, %s70
      %p84 = scmp.eq.s32.totalorder %s20, 1
      %p85 = por %p83, %p84
      %p87 = scmp.ne.s32.totalorder %s70, %s86
      %p88 = scmp.eq.s32.totalorder %s20, 0
      %p89 = por %p87, %p88
      %s91 = sadd.s32 %s90, 1
      %p94 = scmp.eq.s32.totalorder %s14, 1
      %p95 = scmp.ne.s32.totalorder %s90, %s92
      %p96 = scmp.eq.s32.totalorder %s14, 0
      %p97 = por %p95, %p96
      %p98 = scmp.ne.s32.totalorder %s90, %s92
      %p99 = scmp.eq.s32.totalorder %s19, 1
      %p100 = por %p98, %p99
      %p101 = scmp.ne.s32.totalorder %s92, %s93
      %p102 = scmp.eq.s32.totalorder %s19, 0
      %p103 = por %p101, %p102
      %p104 = scmp.ne.s32.totalorder %s92, %s93
      %p105 = scmp.eq.s32.totalorder %s20, 1
      %p106 = por %p104, %p105
      %p108 = scmp.ne.s32.totalorder %s93, %s107
      %p109 = scmp.eq.s32.totalorder %s20, 0
      %p110 = por %p108, %p109
      %s112 = sadd.s32 %s111, 1
      %p115 = scmp.eq.s32.totalorder %s14, 1
      %p116 = scmp.ne.s32.totalorder %s111, %s113
      %p117 = scmp.eq.s32.totalorder %s14, 0
      %p118 = por %p116, %p117
      %p119 = scmp.ne.s32.totalorder %s111, %s113
      %p120 = scmp.eq.s32.totalorder %s19, 1
      %p121 = por %p119, %p120
      %p122 = scmp.ne.s32.totalorder %s113, %s114
      %p123 = scmp.eq.s32.totalorder %s19, 0
      %p124 = por %p122, %p123
      %p125 = scmp.ne.s32.totalorder %s113, %s114
      %p126 = scmp.eq.s32.totalorder %s20, 1
      %p127 = por %p125, %p126
      %p129 = scmp.ne.s32.totalorder %s114, %s128
      %p130 = scmp.eq.s32.totalorder %s20, 0
      %p131 = por %p129, %p130
      %s132 = ssub.s32 %s21, %s33
      %s133 = ssub.s32 %s22, %s29
      %s134 = sor.u32 %s132, %s133
      %p135 = scmp.eq.s32.totalorder %s134, 0
      %s137 = sadd.s32 %s136, 1
      %s138 = scalar_select %p135, %s136, %s137
      %p141 = pneg %p135
      %p142 = scmp.eq.s32.totalorder %s14, 1
      %p143 = por %p141, %p142
      %p144 = scmp.ne.s32.totalorder %s136, %s139
      %p145 = scmp.eq.s32.totalorder %s14, 0
      %p146 = por %p144, %p145
      %p147 = scmp.ne.s32.totalorder %s136, %s139
      %p148 = scmp.eq.s32.totalorder %s19, 1
      %p149 = por %p147, %p148
      %p150 = scmp.ne.s32.totalorder %s139, %s140
      %p151 = scmp.eq.s32.totalorder %s19, 0
      %p152 = por %p150, %p151
      %p153 = scmp.ne.s32.totalorder %s139, %s140
      %p154 = scmp.eq.s32.totalorder %s20, 1
      %p155 = por %p153, %p154
      %p157 = scmp.ne.s32.totalorder %s140, %s156
      %p158 = scmp.eq.s32.totalorder %s20, 0
      %p159 = por %p157, %p158
      %p160 = scmp.le.s32.totalorder 1, %s14
      %p161 = scmp.lt.s32.totalorder %s14, 3
      %p162 = pnand %p160, %p161
      %p163 = pneg %p162
      // Predicated region
      $region9: #{tpu_custom_call.1} parent=5 // pred_check
        _
      $region10: #{tpu_custom_call.1} parent=5 // pred_check_branch
        %165 = sbr.rel (%p162) target = $region12
      $region11: #{tpu_custom_call.1} parent=5 // pred_region
        %s166 = ssub.s32 %s14, 1
        // Predicated region
        $region13: #{tpu_custom_call.1} parent=11 // pred_check
          %p167 = pneg %p103
        $region14: #{tpu_custom_call.1} parent=11 // pred_check_branch
          %169 = sbr.rel (%p167) target = $region16
        $region15: #{tpu_custom_call.1} parent=11 // pred_region
          %s171 = ssub.s32 1024, 1024
          %172 = vsyncadd [#allocation5], %s171
          %s173 = sshll.u32 [#allocation4], 4
          %s174 = int_to_ptr.vmem [resolvable:$true] %s173
          %179 = dma.hbm_to_vmem [thread:$0]  %s2, 1024, %s174, [#allocation5], 128, 128, 8
        $region16: #{tpu_custom_call.1} parent=11 // pred_fallthru
          _
        // Predicated region
        $region17: #{tpu_custom_call.1} parent=11 // pred_check
          %p180 = pneg %p124
        $region18: #{tpu_custom_call.1} parent=11 // pred_check_branch
          %182 = sbr.rel (%p180) target = $region20
        $region19: #{tpu_custom_call.1} parent=11 // pred_region
          _
        $region20: #{tpu_custom_call.1} parent=11 // pred_fallthru
          _
      $region12: #{tpu_custom_call.1} parent=5 // pred_fallthru
        _
      %p183 = scmp.lt.s32.totalorder %s14, 2
      // Predicated region
      $region21: #{tpu_custom_call.1} parent=5 // pred_check
        %p184 = pneg %p183
      $region22: #{tpu_custom_call.1} parent=5 // pred_check_branch
        %186 = sbr.rel (%p184) target = $region24
      $region23: #{tpu_custom_call.1} parent=5 // pred_region
        // Predicated region
        $region25: #{tpu_custom_call.1} parent=23 // pred_check
          %p187 = pneg %p48
        $region26: #{tpu_custom_call.1} parent=23 // pred_check_branch
          %189 = sbr.rel (%p187) target = $region28
        $region27: #{tpu_custom_call.1} parent=23 // pred_region
          %s190 = smul.u32 4, %s21
          %p191 = scmp.lt.s32.totalorder %s190, 7
          %s192 = scalar_select %p191, %s190, 7
          %p193 = scmp.lt.s32.totalorder %s22, 0
          %s194 = scalar_select %p193, %s22, 0
          %s195 = sadd.s32 %s194, %s192
          %s196 = smul.addr %s195, 8
          %s197 = scalar_lea.vmem %s0, %s196
          %s198 = smul.u32 4, %s21
        $region28: #{tpu_custom_call.1} parent=23 // pred_fallthru
          _
        // Predicated region
        $region29: #{tpu_custom_call.1} parent=23 // pred_check
          %p199 = pneg %p76
        $region30: #{tpu_custom_call.1} parent=23 // pred_check_branch
          %201 = sbr.rel (%p199) target = $region32
        $region31: #{tpu_custom_call.1} parent=23 // pred_region
          %s202 = sand.u32 %s66, 1
          %s203 = scalar_lea.sflag [#allocation3], %s202
          %s204 = sand.u32 %s66, 1
          %s205 = smul.addr %s204, 32
          %s206 = scalar_lea.vmem [#allocation2], %s205
          %s207 = smul.u32 4, %s21
          %s209 = ssub.s32 512, 512
          %210 = vsyncadd %s203, %s209
          %s211 = sadd.s32 %s22, %s207
          %s212 = smul.addr %s211, 128
          %s213 = scalar_lea.hbm %s1, %s212
          %s214 = sshll.u32 %s206, 4
          %s215 = int_to_ptr.vmem [resolvable:$true] %s214
          %220 = dma.hbm_to_vmem [thread:$0]  %s213, 512, %s215, %s203, 128, 128, 8
        $region32: #{tpu_custom_call.1} parent=23 // pred_fallthru
          _
      $region24: #{tpu_custom_call.1} parent=5 // pred_fallthru
        _
      %p221 = scmp.le.s32.totalorder 1, %s14
      %p222 = scmp.lt.s32.totalorder %s14, 3
      %p223 = pnand %p221, %p222
      %p224 = pneg %p223
      // Predicated region
      $region33: #{tpu_custom_call.1} parent=5 // pred_check
        _
      $region34: #{tpu_custom_call.1} parent=5 // pred_check_branch
        %226 = sbr.rel (%p223) target = $region36
      $region35: #{tpu_custom_call.1} parent=5 // pred_region
        %s227 = ssub.s32 %s14, 1
        %s228 = sand.u32 %s69, 1
        %s229 = scalar_lea.sflag [#allocation3], %s228
        %s230 = sand.u32 %s69, 1
        %s231 = smul.addr %s230, 32
        %s232 = scalar_lea.vmem [#allocation2], %s231
        // Predicated region
        $region37: #{tpu_custom_call.1} parent=35 // pred_check
          %p233 = pneg %p82
        $region38: #{tpu_custom_call.1} parent=35 // pred_check_branch
          %235 = sbr.rel (%p233) target = $region40
        $region39: #{tpu_custom_call.1} parent=35 // pred_region
          %236 = dma.done %s229, 512
        $region40: #{tpu_custom_call.1} parent=35 // pred_fallthru
          _
        // Predicated region
        $region41: #{tpu_custom_call.1} parent=35 // pred_check
          %p237 = pneg %p103
        $region42: #{tpu_custom_call.1} parent=35 // pred_check_branch
          %239 = sbr.rel (%p237) target = $region44
        $region43: #{tpu_custom_call.1} parent=35 // pred_region
          %240 = dma.done [#allocation5], 1024
        $region44: #{tpu_custom_call.1} parent=35 // pred_fallthru
          _
        %s241 = smul.u32 4, %s23
        %p242 = scmp.lt.s32.totalorder %s241, 7
        %s243 = scalar_select %p242, %s241, 7
        %p244 = scmp.lt.s32.totalorder %s24, 0
        %s245 = scalar_select %p244, %s24, 0
        %s246 = sadd.s32 %s245, %s243
        %s247 = smul.addr %s246, 8
        %s248 = scalar_lea.vmem %s0, %s247
        %p249 = pneg %p54
        %p250 = pneg %p51
        %s251 = sand.u32 %s69, 1
        %s252 = scalar_lea.sflag [#allocation3], %s251
        %s253 = sand.u32 %s69, 1
        %s254 = smul.addr %s253, 32
        %s255 = scalar_lea.vmem [#allocation2], %s254
        %p256 = pneg %p82
        %p257 = pneg %p79
        %p258 = pneg %p103
        %p259 = pneg %p100
        %p260 = pneg %p124
        %p261 = pneg %p121
        %p262 = pneg %p152
        %p263 = pneg %p149
        %s264 = smul.u32 4, %s23
        %p265 = scmp.lt.s32.totalorder %s264, 7
        %s266 = scalar_select %p265, %s264, 7
        %p267 = scmp.lt.s32.totalorder %s24, 0
        %s268 = scalar_select %p267, %s24, 0
        %s269 = smul.addr %s266, 4
        %s270 = sadd.s32 %s268, %s269
        %s271 = smul.addr %s270, 8
        %s272 = scalar_lea.vmem %s4, %s271
        %s273 = smul.u32 4, %s23
        %p274 = scmp.lt.s32.totalorder %s273, 7
        %s275 = scalar_select %p274, %s273, 7
        %p276 = scmp.lt.s32.totalorder %s24, 0
        %s277 = scalar_select %p276, %s24, 0
        %s278 = sadd.s32 %s277, %s275
        %s279 = smul.addr %s278, 8
        %s280 = scalar_lea.vmem %s0, %s279
        %s281 = smul.u32 4, %s23
        %s282 = smul.u32 4, %s23
        %s283 = smul.u32 4, %s23
        %p284 = scmp.lt.s32.totalorder %s283, 7
        %s285 = scalar_select %p284, %s283, 7
        %p286 = scmp.lt.s32.totalorder %s24, 0
        %s287 = scalar_select %p286, %s24, 0
        %s288 = smul.addr %s285, 4
        %s289 = sadd.s32 %s287, %s288
        %s290 = smul.addr %s289, 8
        %s291 = scalar_lea.vmem %s4, %s290
        %s292 = smul.u32 4, %s23
        %v293 = vld [vmem:[%s280] sm:$0xff]
        %v294 = vld [vmem:[%s280 + $0x8] sm:$0xff]
        %v295 = vld [vmem:[%s280 + $0x10] sm:$0xff]
        %v296 = vld [vmem:[%s280 + $0x18] sm:$0xff]
        %v297 = vld [vmem:[%s232] sm:$0xff]
        %v298 = vld [vmem:[%s232 + $0x8] sm:$0xff]
        %v299 = vld [vmem:[%s232 + $0x10] sm:$0xff]
        %v300 = vld [vmem:[%s232 + $0x18] sm:$0xff]
        %305 = vrot.lane.b32.xlu0 %v297, 32
        %v306 = vpop.permute.xlu0 %305
        %307 = vrot.lane.b32.xlu0 %v298, 32
        %v308 = vpop.permute.xlu0 %307
        %309 = vrot.lane.b32.xlu0 %v299, 32
        %v310 = vpop.permute.xlu0 %309
        %311 = vrot.lane.b32.xlu0 %v300, 32
        %v312 = vpop.permute.xlu0 %311
        %vm317 = vcmask 261120
        %v318 = vsel %vm317, %v293, %v306
        %v319 = vsel %vm317, %v294, %v308
        %v320 = vsel %vm317, %v295, %v310
        %v321 = vsel %vm317, %v296, %v312
        %v322 = vld [vmem:[#allocation4] sm:$0xff]
        %v323 = vld [vmem:[#allocation4 + $0x8] sm:$0xff]
        %v324 = vld [vmem:[#allocation4 + $0x10] sm:$0xff]
        %v325 = vld [vmem:[#allocation4 + $0x18] sm:$0xff]
        %v326 = vld [vmem:[#allocation4 + $0x20] sm:$0xff]
        %v327 = vld [vmem:[#allocation4 + $0x28] sm:$0xff]
        %v328 = vld [vmem:[#allocation4 + $0x30] sm:$0xff]
        %v329 = vld [vmem:[#allocation4 + $0x38] sm:$0xff]
        %vm330 = vcmask 523264
        %v332 = vsel %vm330, %v318, 0
        %v335 = vsel %vm330, %v319, 0
        %v338 = vsel %vm330, %v320, 0
        %v341 = vsel %vm330, %v321, 0
        %343 = vmatprep.subr.mxu0 0.0
        %344 = vmatpush1.msra.mxu0 0.0
        %345 = vmatprep.subr.mxu0 0.0
        %346 = vmatpush1.msra.mxu0 0.0
        %347 = vmatprep.subr.mxu0 0.0
        %348 = vmatpush1.msra.mxu0 0.0
        %349 = vmatprep.subr.mxu0 0.0
        %350 = vmatpush1.msra.mxu0 0.0
        %351 = vmatprep.subr.mxu0 0.0
        %352 = vmatpush1.msra.mxu0 0.0
        %353 = vmatprep.subr.mxu0 0.0
        %354 = vmatpush1.msra.mxu0 0.0
        %355 = vmatprep.subr.mxu0 0.0
        %356 = vmatpush1.msra.mxu0 0.0
        %357 = vmatprep.subr.mxu0 0.0
        %358 = vmatpush1.msra.mxu0 0.0
        %359 = vmatprep.subr.mxu0 0.0
        %360 = vmatpush1.msra.mxu0 %v329
        %361 = vmatprep.subr.mxu0 0.0
        %362 = vmatpush1.msra.mxu0 %v328
        %363 = vmatprep.subr.mxu0 0.0
        %364 = vmatpush1.msra.mxu0 %v327
        %365 = vmatprep.subr.mxu0 0.0
        %366 = vmatpush1.msra.mxu0 %v326
        %367 = vmatprep.subr.mxu0 0.0
        %368 = vmatpush1.msra.mxu0 %v325
        %369 = vmatprep.subr.mxu0 0.0
        %370 = vmatpush1.msra.mxu0 %v324
        %371 = vmatprep.subr.mxu0 0.0
        %372 = vmatpush1.msra.mxu0 %v323
        %373 = vmatprep.subr.mxu0 0.0
        %374 = vmatpush1.msra.mxu0 %v322
        %375 = vmatprep.subr.mxu0 0.0
        %376 = vmatpush2.msra.mxu0 0.0
        %377 = vmatprep.subr.mxu0 0.0
        %378 = vmatpush2.msra.mxu0 0.0
        %379 = vmatprep.subr.mxu0 0.0
        %380 = vmatpush2.msra.mxu0 0.0
        %381 = vmatprep.subr.mxu0 0.0
        %382 = vmatpush2.msra.mxu0 0.0
        %383 = vmatprep.subr.mxu0 0.0
        %384 = vmatpush2.msra.mxu0 0.0
        %385 = vmatprep.subr.mxu0 0.0
        %386 = vmatpush2.msra.mxu0 0.0
        %387 = vmatprep.subr.mxu0 0.0
        %388 = vmatpush2.msra.mxu0 0.0
        %389 = vmatprep.subr.mxu0 0.0
        %390 = vmatpush2.msra.mxu0 0.0
        %391 = vmatprep.subr.mxu0 0.0
        %392 = vmatpush2.msra.mxu0 0.0
        %393 = vmatprep.subr.mxu0 0.0
        %394 = vmatpush2.msra.mxu0 0.0
        %395 = vmatprep.subr.mxu0 0.0
        %396 = vmatpush2.msra.mxu0 0.0
        %397 = vmatprep.subr.mxu0 0.0
        %398 = vmatpush2.msra.mxu0 0.0
        %399 = vmatprep.subr.mxu0 0.0
        %400 = vmatpush2.msra.mxu0 0.0
        %401 = vmatprep.subr.mxu0 0.0
        %402 = vmatpush2.msra.mxu0 0.0
        %403 = vmatprep.subr.mxu0 0.0
        %404 = vmatpush2.msra.mxu0 0.0
        %405 = vmatprep.subr.mxu0 0.0
        %406 = vmatpush2.msra.mxu0 0.0
        %407 = vmatprep.mubr.f32.mxu0 0.0
        %408 = vmatmul.mubr.f32.gmra.mxu0 %v332
        %v409 = vpop.f32.mrf.mxu0
        %v410 = vadd.f32 0.0, %v409
        %v411 = vpop.f32.mrf.mxu0
        %412 = vmatprep.mubr.f32.mxu0 0.0
        %413 = vmatmul.mubr.f32.gmra.mxu0 %v335
        %v414 = vpop.f32.mrf.mxu0
        %v415 = vadd.f32 0.0, %v414
        %v416 = vpop.f32.mrf.mxu0
        %417 = vmatprep.mubr.f32.mxu0 0.0
        %418 = vmatmul.mubr.f32.gmra.mxu0 %v338
        %v419 = vpop.f32.mrf.mxu0
        %v420 = vadd.f32 0.0, %v419
        %v421 = vpop.f32.mrf.mxu0
        %422 = vmatprep.mubr.f32.mxu0 0.0
        %423 = vmatmul.mubr.f32.gmra.mxu0 %v341
        %v424 = vpop.f32.mrf.mxu0
        %v425 = vadd.f32 0.0, %v424
        %v426 = vpop.f32.mrf.mxu0
        %427 = vdwg.mxu0
        %v428 = vxor.u32 %v410, 2147483648
        %v429 = vxor.u32 %v415, 2147483648
        %v430 = vxor.u32 %v420, 2147483648
        %v431 = vxor.u32 %v425, 2147483648
        %v432 = vmul.f32 %v428, 1.442695
        %v433 = vpow.pop %v432
        %v434 = vmul.f32 %v429, 1.442695
        %v435 = vpow.pop %v434
        %v436 = vmul.f32 %v430, 1.442695
        %v437 = vpow.pop %v436
        %v438 = vmul.f32 %v431, 1.442695
        %v439 = vpow.pop %v438
        %v440 = vadd.f32 %v433, 1.0
        %v441 = vadd.f32 %v435, 1.0
        %v442 = vadd.f32 %v437, 1.0
        %v443 = vadd.f32 %v439, 1.0
        %v444 = vrcp.pop %v440
        %v445 = vmul.f32 1.0, %v444
        %v446 = vrcp.pop %v441
        %v447 = vmul.f32 1.0, %v446
        %v448 = vrcp.pop %v442
        %v449 = vmul.f32 1.0, %v448
        %v450 = vrcp.pop %v443
        %v451 = vmul.f32 1.0, %v450
        %456 = vrot.lane.b32.xlu0 %v410, 64
        %v457 = vpop.permute.xlu0 %456
        %458 = vrot.lane.b32.xlu0 %v415, 64
        %v459 = vpop.permute.xlu0 %458
        %460 = vrot.lane.b32.xlu0 %v420, 64
        %v461 = vpop.permute.xlu0 %460
        %462 = vrot.lane.b32.xlu0 %v425, 64
        %v463 = vpop.permute.xlu0 %462
        %v468 = vsub.f32 %v410, %v457
        %v469 = vsub.f32 %v415, %v459
        %v470 = vsub.f32 %v420, %v461
        %v471 = vsub.f32 %v425, %v463
        %v472 = vmul.f32 %v468, 0.5
        %v473 = vmul.f32 %v469, 0.5
        %v474 = vmul.f32 %v470, 0.5
        %v475 = vmul.f32 %v471, 0.5
        %v476 = vmul.f32 %v445, %v457
        %v477 = vmul.f32 %v447, %v459
        %v478 = vmul.f32 %v449, %v461
        %v479 = vmul.f32 %v451, %v463
        %v480 = vadd.f32 %v472, %v476
        %v481 = vadd.f32 %v473, %v477
        %v482 = vadd.f32 %v474, %v478
        %v483 = vadd.f32 %v475, %v479
        %v484 = vld [vmem:[%s3] sm:$0xff]
        %v485 = vld [vmem:[%s3 + $0x8] sm:$0xff]
        %v486 = vld [vmem:[%s3 + $0x10] sm:$0xff]
        %v487 = vld [vmem:[%s3 + $0x18] sm:$0xff]
        %v488 = vld [vmem:[%s3 + $0x20] sm:$0xff]
        %v489 = vld [vmem:[%s3 + $0x28] sm:$0xff]
        %v490 = vld [vmem:[%s3 + $0x30] sm:$0xff]
        %v491 = vld [vmem:[%s3 + $0x38] sm:$0xff]
        %v493 = vsel %vm330, %v480, 0
        %v496 = vsel %vm330, %v481, 0
        %v499 = vsel %vm330, %v482, 0
        %v502 = vsel %vm330, %v483, 0
        %504 = vmatprep.subr.mxu0 0.0
        %505 = vmatpush1.msra.mxu0 0.0
        %506 = vmatprep.subr.mxu0 0.0
        %507 = vmatpush1.msra.mxu0 0.0
        %508 = vmatprep.subr.mxu0 0.0
        %509 = vmatpush1.msra.mxu0 0.0
        %510 = vmatprep.subr.mxu0 0.0
        %511 = vmatpush1.msra.mxu0 0.0
        %512 = vmatprep.subr.mxu0 0.0
        %513 = vmatpush1.msra.mxu0 0.0
        %514 = vmatprep.subr.mxu0 0.0
        %515 = vmatpush1.msra.mxu0 0.0
        %516 = vmatprep.subr.mxu0 0.0
        %517 = vmatpush1.msra.mxu0 0.0
        %518 = vmatprep.subr.mxu0 0.0
        %519 = vmatpush1.msra.mxu0 0.0
        %520 = vmatprep.subr.mxu0 0.0
        %521 = vmatpush1.msra.mxu0 %v491
        %522 = vmatprep.subr.mxu0 0.0
        %523 = vmatpush1.msra.mxu0 %v490
        %524 = vmatprep.subr.mxu0 0.0
        %525 = vmatpush1.msra.mxu0 %v489
        %526 = vmatprep.subr.mxu0 0.0
        %527 = vmatpush1.msra.mxu0 %v488
        %528 = vmatprep.subr.mxu0 0.0
        %529 = vmatpush1.msra.mxu0 %v487
        %530 = vmatprep.subr.mxu0 0.0
        %531 = vmatpush1.msra.mxu0 %v486
        %532 = vmatprep.subr.mxu0 0.0
        %533 = vmatpush1.msra.mxu0 %v485
        %534 = vmatprep.subr.mxu0 0.0
        %535 = vmatpush1.msra.mxu0 %v484
        %536 = vmatprep.subr.mxu0 0.0
        %537 = vmatpush2.msra.mxu0 0.0
        %538 = vmatprep.subr.mxu0 0.0
        %539 = vmatpush2.msra.mxu0 0.0
        %540 = vmatprep.subr.mxu0 0.0
        %541 = vmatpush2.msra.mxu0 0.0
        %542 = vmatprep.subr.mxu0 0.0
        %543 = vmatpush2.msra.mxu0 0.0
        %544 = vmatprep.subr.mxu0 0.0
        %545 = vmatpush2.msra.mxu0 0.0
        %546 = vmatprep.subr.mxu0 0.0
        %547 = vmatpush2.msra.mxu0 0.0
        %548 = vmatprep.subr.mxu0 0.0
        %549 = vmatpush2.msra.mxu0 0.0
        %550 = vmatprep.subr.mxu0 0.0
        %551 = vmatpush2.msra.mxu0 0.0
        %552 = vmatprep.subr.mxu0 0.0
        %553 = vmatpush2.msra.mxu0 0.0
        %554 = vmatprep.subr.mxu0 0.0
        %555 = vmatpush2.msra.mxu0 0.0
        %556 = vmatprep.subr.mxu0 0.0
        %557 = vmatpush2.msra.mxu0 0.0
        %558 = vmatprep.subr.mxu0 0.0
        %559 = vmatpush2.msra.mxu0 0.0
        %560 = vmatprep.subr.mxu0 0.0
        %561 = vmatpush2.msra.mxu0 0.0
        %562 = vmatprep.subr.mxu0 0.0
        %563 = vmatpush2.msra.mxu0 0.0
        %564 = vmatprep.subr.mxu0 0.0
        %565 = vmatpush2.msra.mxu0 0.0
        %566 = vmatprep.subr.mxu0 0.0
        %567 = vmatpush2.msra.mxu0 0.0
        %568 = vmatprep.mubr.f32.mxu0 0.0
        %569 = vmatmul.mubr.f32.gmra.mxu0 %v493
        %v570 = vpop.f32.mrf.mxu0
        %v571 = vadd.f32 0.0, %v570
        %v572 = vpop.f32.mrf.mxu0
        %573 = vmatprep.mubr.f32.mxu0 0.0
        %574 = vmatmul.mubr.f32.gmra.mxu0 %v496
        %v575 = vpop.f32.mrf.mxu0
        %v576 = vadd.f32 0.0, %v575
        %v577 = vpop.f32.mrf.mxu0
        %578 = vmatprep.mubr.f32.mxu0 0.0
        %579 = vmatmul.mubr.f32.gmra.mxu0 %v499
        %v580 = vpop.f32.mrf.mxu0
        %v581 = vadd.f32 0.0, %v580
        %v582 = vpop.f32.mrf.mxu0
        %583 = vmatprep.mubr.f32.mxu0 0.0
        %584 = vmatmul.mubr.f32.gmra.mxu0 %v502
        %v585 = vpop.f32.mrf.mxu0
        %v586 = vadd.f32 0.0, %v585
        %v587 = vpop.f32.mrf.mxu0
        %588 = vdwg.mxu0
        %589 = vxpose.xlu0.b32.start [1/16] %v571, 128
        %590 = vxpose.xlu0.b32.cont [2/16] 0.0, 128
        %591 = vxpose.xlu0.b32.cont [3/16] 0.0, 128
        %592 = vxpose.xlu0.b32.cont [4/16] 0.0, 128
        %593 = vxpose.xlu0.b32.cont [5/16] 0.0, 128
        %594 = vxpose.xlu0.b32.cont [6/16] 0.0, 128
        %595 = vxpose.xlu0.b32.cont [7/16] 0.0, 128
        %596 = vxpose.xlu0.b32.cont [8/16] 0.0, 128
        %597 = vxpose.xlu0.b32.cont [9/16] 0.0, 128
        %598 = vxpose.xlu0.b32.cont [10/16] 0.0, 128
        %599 = vxpose.xlu0.b32.cont [11/16] 0.0, 128
        %600 = vxpose.xlu0.b32.cont [12/16] 0.0, 128
        %601 = vxpose.xlu0.b32.cont [13/16] 0.0, 128
        %602 = vxpose.xlu0.b32.cont [14/16] 0.0, 128
        %603 = vxpose.xlu0.b32.cont [15/16] 0.0, 128
        %604 = vxpose.xlu0.b32.end [16/16] 0.0, 128
        %v605 = vpop.trf.xlu0
        %v606 = vpop.trf.xlu0
        %v607 = vpop.trf.xlu0
        %v608 = vpop.trf.xlu0
        %v609 = vpop.trf.xlu0
        %v610 = vpop.trf.xlu0
        %v611 = vpop.trf.xlu0
        %v612 = vpop.trf.xlu0
        %v613 = vpop.trf.xlu0
        %v614 = vpop.trf.xlu0
        %v615 = vpop.trf.xlu0
        %v616 = vpop.trf.xlu0
        %v617 = vpop.trf.xlu0
        %v618 = vpop.trf.xlu0
        %v619 = vpop.trf.xlu0
        %v620 = vpop.trf.xlu0
        %vm621 = vcmask 64512
        %622 = vst.msk [vmem:[%s291] sm:$0xff] %vm621, %v605
        %623 = vst.msk [vmem:[%s291 + $0x8] sm:$0xff] %vm621, %v606
        %624 = vst.msk [vmem:[%s291 + $0x10] sm:$0xff] %vm621, %v607
        %625 = vst.msk [vmem:[%s291 + $0x18] sm:$0xff] %vm621, %v608
        %626 = vxpose.xlu0.b32.start [1/16] %v576, 128
        %627 = vxpose.xlu0.b32.cont [2/16] 0.0, 128
        %628 = vxpose.xlu0.b32.cont [3/16] 0.0, 128
        %629 = vxpose.xlu0.b32.cont [4/16] 0.0, 128
        %630 = vxpose.xlu0.b32.cont [5/16] 0.0, 128
        %631 = vxpose.xlu0.b32.cont [6/16] 0.0, 128
        %632 = vxpose.xlu0.b32.cont [7/16] 0.0, 128
        %633 = vxpose.xlu0.b32.cont [8/16] 0.0, 128
        %634 = vxpose.xlu0.b32.cont [9/16] 0.0, 128
        %635 = vxpose.xlu0.b32.cont [10/16] 0.0, 128
        %636 = vxpose.xlu0.b32.cont [11/16] 0.0, 128
        %637 = vxpose.xlu0.b32.cont [12/16] 0.0, 128
        %638 = vxpose.xlu0.b32.cont [13/16] 0.0, 128
        %639 = vxpose.xlu0.b32.cont [14/16] 0.0, 128
        %640 = vxpose.xlu0.b32.cont [15/16] 0.0, 128
        %641 = vxpose.xlu0.b32.end [16/16] 0.0, 128
        %v642 = vpop.trf.xlu0
        %v643 = vpop.trf.xlu0
        %v644 = vpop.trf.xlu0
        %v645 = vpop.trf.xlu0
        %v646 = vpop.trf.xlu0
        %v647 = vpop.trf.xlu0
        %v648 = vpop.trf.xlu0
        %v649 = vpop.trf.xlu0
        %v650 = vpop.trf.xlu0
        %v651 = vpop.trf.xlu0
        %v652 = vpop.trf.xlu0
        %v653 = vpop.trf.xlu0
        %v654 = vpop.trf.xlu0
        %v655 = vpop.trf.xlu0
        %v656 = vpop.trf.xlu0
        %v657 = vpop.trf.xlu0
        %s658 = scalar_lea.vmem %s291, 32
        %659 = vst.msk [vmem:[%s658] sm:$0xff] %vm621, %v642
        %660 = vst.msk [vmem:[%s658 + $0x8] sm:$0xff] %vm621, %v643
        %661 = vst.msk [vmem:[%s658 + $0x10] sm:$0xff] %vm621, %v644
        %662 = vst.msk [vmem:[%s658 + $0x18] sm:$0xff] %vm621, %v645
        %663 = vxpose.xlu0.b32.start [1/16] %v581, 128
        %664 = vxpose.xlu0.b32.cont [2/16] 0.0, 128
        %665 = vxpose.xlu0.b32.cont [3/16] 0.0, 128
        %666 = vxpose.xlu0.b32.cont [4/16] 0.0, 128
        %667 = vxpose.xlu0.b32.cont [5/16] 0.0, 128
        %668 = vxpose.xlu0.b32.cont [6/16] 0.0, 128
        %669 = vxpose.xlu0.b32.cont [7/16] 0.0, 128
        %670 = vxpose.xlu0.b32.cont [8/16] 0.0, 128
        %671 = vxpose.xlu0.b32.cont [9/16] 0.0, 128
        %672 = vxpose.xlu0.b32.cont [10/16] 0.0, 128
        %673 = vxpose.xlu0.b32.cont [11/16] 0.0, 128
        %674 = vxpose.xlu0.b32.cont [12/16] 0.0, 128
        %675 = vxpose.xlu0.b32.cont [13/16] 0.0, 128
        %676 = vxpose.xlu0.b32.cont [14/16] 0.0, 128
        %677 = vxpose.xlu0.b32.cont [15/16] 0.0, 128
        %678 = vxpose.xlu0.b32.end [16/16] 0.0, 128
        %v679 = vpop.trf.xlu0
        %v680 = vpop.trf.xlu0
        %v681 = vpop.trf.xlu0
        %v682 = vpop.trf.xlu0
        %v683 = vpop.trf.xlu0
        %v684 = vpop.trf.xlu0
        %v685 = vpop.trf.xlu0
        %v686 = vpop.trf.xlu0
        %v687 = vpop.trf.xlu0
        %v688 = vpop.trf.xlu0
        %v689 = vpop.trf.xlu0
        %v690 = vpop.trf.xlu0
        %v691 = vpop.trf.xlu0
        %v692 = vpop.trf.xlu0
        %v693 = vpop.trf.xlu0
        %v694 = vpop.trf.xlu0
        %s695 = scalar_lea.vmem %s291, 64
        %696 = vst.msk [vmem:[%s695] sm:$0xff] %vm621, %v679
        %697 = vst.msk [vmem:[%s695 + $0x8] sm:$0xff] %vm621, %v680
        %698 = vst.msk [vmem:[%s695 + $0x10] sm:$0xff] %vm621, %v681
        %699 = vst.msk [vmem:[%s695 + $0x18] sm:$0xff] %vm621, %v682
        %700 = vxpose.xlu0.b32.start [1/16] %v586, 128
        %701 = vxpose.xlu0.b32.cont [2/16] 0.0, 128
        %702 = vxpose.xlu0.b32.cont [3/16] 0.0, 128
        %703 = vxpose.xlu0.b32.cont [4/16] 0.0, 128
        %704 = vxpose.xlu0.b32.cont [5/16] 0.0, 128
        %705 = vxpose.xlu0.b32.cont [6/16] 0.0, 128
        %706 = vxpose.xlu0.b32.cont [7/16] 0.0, 128
        %707 = vxpose.xlu0.b32.cont [8/16] 0.0, 128
        %708 = vxpose.xlu0.b32.cont [9/16] 0.0, 128
        %709 = vxpose.xlu0.b32.cont [10/16] 0.0, 128
        %710 = vxpose.xlu0.b32.cont [11/16] 0.0, 128
        %711 = vxpose.xlu0.b32.cont [12/16] 0.0, 128
        %712 = vxpose.xlu0.b32.cont [13/16] 0.0, 128
        %713 = vxpose.xlu0.b32.cont [14/16] 0.0, 128
        %714 = vxpose.xlu0.b32.cont [15/16] 0.0, 128
        %715 = vxpose.xlu0.b32.end [16/16] 0.0, 128
        %v716 = vpop.trf.xlu0
        %v717 = vpop.trf.xlu0
        %v718 = vpop.trf.xlu0
        %v719 = vpop.trf.xlu0
        %v720 = vpop.trf.xlu0
        %v721 = vpop.trf.xlu0
        %v722 = vpop.trf.xlu0
        %v723 = vpop.trf.xlu0
        %v724 = vpop.trf.xlu0
        %v725 = vpop.trf.xlu0
        %v726 = vpop.trf.xlu0
        %v727 = vpop.trf.xlu0
        %v728 = vpop.trf.xlu0
        %v729 = vpop.trf.xlu0
        %v730 = vpop.trf.xlu0
        %v731 = vpop.trf.xlu0
        %s732 = scalar_lea.vmem %s291, 96
        %733 = vst.msk [vmem:[%s732] sm:$0xff] %vm621, %v716
        %734 = vst.msk [vmem:[%s732 + $0x8] sm:$0xff] %vm621, %v717
        %735 = vst.msk [vmem:[%s732 + $0x10] sm:$0xff] %vm621, %v718
        %736 = vst.msk [vmem:[%s732 + $0x18] sm:$0xff] %vm621, %v719
        %s737 = smul.u32 4, %s23
        %p738 = scmp.lt.s32.totalorder %s737, 7
        %s739 = scalar_select %p738, %s737, 7
        %p740 = scmp.lt.s32.totalorder %s24, 0
        %s741 = scalar_select %p740, %s24, 0
        %s742 = smul.addr %s739, 4
        %s743 = sadd.s32 %s741, %s742
        %s744 = smul.addr %s743, 8
        %s745 = scalar_lea.vmem %s4, %s744
        // Predicated region
        $region45: #{tpu_custom_call.1} parent=35 // pred_check
          %p746 = pneg %p149
        $region46: #{tpu_custom_call.1} parent=35 // pred_check_branch
          %748 = sbr.rel (%p746) target = $region48
        $region47: #{tpu_custom_call.1} parent=35 // pred_region
          %s749 = smul.u32 4, %s23
        $region48: #{tpu_custom_call.1} parent=35 // pred_fallthru
          _
      $region36: #{tpu_custom_call.1} parent=5 // pred_fallthru
        _
      %p750 = scmp.le.s32.totalorder 2, %s14
      // Predicated region
      $region49: #{tpu_custom_call.1} parent=5 // pred_check
        %p751 = pneg %p750
      $region50: #{tpu_custom_call.1} parent=5 // pred_check_branch
        %753 = sbr.rel (%p751) target = $region52
      $region51: #{tpu_custom_call.1} parent=5 // pred_region
        %s754 = ssub.s32 %s14, 2
        // Predicated region
        $region53: #{tpu_custom_call.1} parent=51 // pred_check
          %p755 = pneg %p155
        $region54: #{tpu_custom_call.1} parent=51 // pred_check_branch
          %757 = sbr.rel (%p755) target = $region56
        $region55: #{tpu_custom_call.1} parent=51 // pred_region
          %s758 = smul.u32 4, %s25
          %p759 = scmp.lt.s32.totalorder %s758, 7
          %s760 = scalar_select %p759, %s758, 7
          %p761 = scmp.lt.s32.totalorder %s26, 0
          %s762 = scalar_select %p761, %s26, 0
          %s763 = smul.addr %s760, 4
          %s764 = sadd.s32 %s762, %s763
          %s765 = smul.addr %s764, 8
          %s766 = scalar_lea.vmem %s4, %s765
        $region56: #{tpu_custom_call.1} parent=51 // pred_fallthru
          _
      $region52: #{tpu_custom_call.1} parent=5 // pred_fallthru
        _
    $region6: #{tpu_custom_call.1} parent=1 // loop_footer
      %s18 = sadd.s32 1, %s14
    $region7: #{tpu_custom_call.1} parent=1 // loop_footer_branch
      %13 = sbr.rel target = $region3
    $region8: #{tpu_custom_call.1} parent=1 // loop_exit
      _
    %767 = vsyncpa [#allocation3], 1
    %s768 = scalar_lea.sflag [#allocation3], 1
    %769 = vsyncpa %s768, 1
    %770 = vsyncpa [#allocation5], 1

</llo_original>
